<compile_context>
chip_gen: v5e
topology: v5e:2x2
jax: 0.10.0
libtpu: 0.0.40
codegen_flags: <defaults>
</compile_context>

<pallas_src>
import functools

import jax
import jax.numpy as jnp
from jax import lax
from jax.experimental import pallas as pl
from jax.experimental.pallas import tpu as pltpu


# ----------------------------------------------------------------------------
# Pallas kernel 1: per-edge affinities  aff = -|| (x[row] - x[col]) @ W ||^2
# Fused difference + in-kernel gather-as-matmul, lane-dense (1, TILE_E) output.
# ----------------------------------------------------------------------------
def _affinity_kernel(row_ref, col_ref, xT_ref, wT_ref, o_ref):
    n_nodes = xT_ref.shape[1]
    tile_e = o_ref.shape[1]
    # One-hot selection difference built from iota (gather-free), (N, TILE_E).
    node_iota = lax.broadcasted_iota(jnp.int32, (n_nodes, tile_e), 0)
    sel = ((node_iota == row_ref[...]).astype(jnp.float32)
           - (node_iota == col_ref[...]).astype(jnp.float32))
    # d_nodes = x^T @ sel  -> per-edge feature difference, (F, TILE_E).
    d_nodes = jnp.dot(xT_ref[...], sel, preferred_element_type=jnp.float32)
    # p = W^T @ d_nodes   -> single projection of the difference, (H, TILE_E).
    p = jnp.dot(wT_ref[...], d_nodes, preferred_element_type=jnp.float32)
    # Sublane reduce -> lane-dense (1, TILE_E) store (no masked vst).
    o_ref[...] = -jnp.sum(p * p, axis=0, keepdims=True)


def edge_affinities(x, row, col, w, *, tile_e=256):
    N, F = x.shape
    H = w.shape[1]
    E = row.shape[0]
    num_tiles = pl.cdiv(E, tile_e)
    e_pad = num_tiles * tile_e
    pad = e_pad - E
    # Padded lane-dense index slabs (padding pairs row=col=0 -> affinity 0,
    # sliced off below).
    row_p = jnp.pad(row.astype(jnp.int32), (0, pad)).reshape(1, e_pad)
    col_p = jnp.pad(col.astype(jnp.int32), (0, pad)).reshape(1, e_pad)
    xT = x.T.astype(jnp.float32)          # (F, N), resident in VMEM
    wT = w.T.astype(jnp.float32)          # (H, F)

    cost = pl.CostEstimate(
        flops=2 * e_pad * (N * F + F * H) + 3 * e_pad * H,
        transcendentals=0,
        bytes_accessed=2 * e_pad * 4 + N * F * 4 + F * H * 4 + e_pad * 4,
    )
    out = pl.pallas_call(
        _affinity_kernel,
        out_shape=jax.ShapeDtypeStruct((1, e_pad), jnp.float32),
        grid=(num_tiles,),
        in_specs=[
            pl.BlockSpec((1, tile_e), lambda i: (0, i)),
            pl.BlockSpec((1, tile_e), lambda i: (0, i)),
            pl.BlockSpec((F, N), lambda i: (0, 0)),
            pl.BlockSpec((H, F), lambda i: (0, 0)),
        ],
        out_specs=pl.BlockSpec((1, tile_e), lambda i: (0, i)),
        compiler_params=pltpu.CompilerParams(
            dimension_semantics=("parallel",)),
        cost_estimate=cost,
    )(row_p, col_p, xT, wT)
    return out[0, :E]


# ----------------------------------------------------------------------------
# Pallas kernel 2: dense label propagation
#   L <- alpha * A_norm @ L + (1 - alpha) * I     (iters times)
# Identity built in-kernel, accumulation directly in o_ref, bf16 MXU matmul.
# ----------------------------------------------------------------------------
def _labelprop_kernel(a_ref, o_ref, *, iters, alpha):
    n = o_ref.shape[0]
    eye = (lax.broadcasted_iota(jnp.int32, (n, n), 0)
           == lax.broadcasted_iota(jnp.int32, (n, n), 1)).astype(jnp.float32)
    resid = (1.0 - alpha) * eye           # hoisted once (no per-iter broadcast)
    o_ref[...] = eye                      # L0 = identity, built in-kernel

    def body(_, carry):
        # dot reads o_ref before the store -> correct read-modify-write.
        o_ref[...] = alpha * jnp.dot(
            a_ref[...], o_ref[...].astype(jnp.bfloat16),
            preferred_element_type=jnp.float32) + resid
        return carry

    lax.fori_loop(0, iters, body, 0, unroll=True)


def label_propagation(a_norm, *, iters=10, alpha=0.9):
    N = a_norm.shape[0]
    a_bf16 = a_norm.astype(jnp.bfloat16)  # halves HBM/VMEM traffic, 3x MXU rate
    a_bytes = N * N * 2
    o_bytes = N * N * 4
    # Size the scoped VMEM limit to the actual resident footprint (+ headroom),
    # clamped below v7x's 64 MiB physical VMEM.
    vmem_limit = min(60 * 1024 * 1024, max(32 * 1024 * 1024,
                                           4 * (a_bytes + o_bytes)))
    cost = pl.CostEstimate(
        flops=2 * N * N * N * iters,
        transcendentals=0,
        bytes_accessed=a_bytes + o_bytes,
    )
    # TODO(synk): for large N (v7x 64 MiB VMEM), stream A from HBM in
    # (TILE_K, N) slabs via a grid axis / pltpu.emit_pipeline instead of
    # keeping the whole A+L resident.
    return pl.pallas_call(
        functools.partial(_labelprop_kernel, iters=iters, alpha=alpha),
        out_shape=jax.ShapeDtypeStruct((N, N), jnp.float32),
        compiler_params=pltpu.CompilerParams(vmem_limit_bytes=vmem_limit),
        cost_estimate=cost,
    )(a_bf16)


# ----------------------------------------------------------------------------
# AffinityAggregation forward (glue in eager JAX, hot paths in Pallas above)
# ----------------------------------------------------------------------------
def affinity_aggregation_forward(x, edge_index, batch, w, threshold,
                                 *, iters=10, alpha=0.9):
    N, F = x.shape
    row, col = edge_index[0], edge_index[1]

    # --- affinities_and_thresholds (concrete realization of abstract method) ---
    affinities = edge_affinities(x, row, col, w)      # Pallas kernel 1 (in-kernel gather)
    losses = -jnp.mean(affinities)    # synthetic auxiliary loss (abstract in ref)

    # --- filter edges + add self loops ---
    # TODO(synk): boolean-mask indexing / int() below are data-dependent shapes;
    # kept eager (not jittable end-to-end), matching the reference semantics.
    keep = affinities > threshold
    row_f = row[keep]
    col_f = col[keep]
    self_idx = jnp.arange(N, dtype=row.dtype)
    row_sl = jnp.concatenate([row_f, self_idx])
    col_sl = jnp.concatenate([col_f, self_idx])
    filtered_edge_index = jnp.stack([row_sl, col_sl])

    # --- PropModel / LabelPropagation on the filtered graph ---
    # dense adjacency: target row <- source col contribution, row-normalized
    adj = jnp.zeros((N, N), jnp.float32).at[col_sl, row_sl].set(1.0)
    deg = jnp.maximum(adj.sum(axis=1, keepdims=True), 1.0)
    a_norm = adj / deg
    l_prop = label_propagation(a_norm, iters=iters, alpha=alpha)  # Pallas kernel 2
    node_labels = jnp.argmax(l_prop, axis=1)

    # --- unique(return_inverse) -> cluster ids ---
    cluster_labels = jnp.unique(node_labels, return_inverse=True)[1].reshape(-1)
    num_clusters = int(cluster_labels.max()) + 1

    # --- max_pool_x: per-cluster feature max, pooled batch ---
    # TODO(synk): segment_max is a data-dependent scatter-reduce; kept as JAX glue.
    coarsened_x = jax.ops.segment_max(x, cluster_labels, num_segments=num_clusters)
    coarsened_batch = jax.ops.segment_max(batch, cluster_labels,
                                          num_segments=num_clusters)

    # --- coalesce(cluster_labels[filtered_edge_index]) ---
    c_row = cluster_labels[row_sl]
    c_col = cluster_labels[col_sl]
    coarse_adj = jnp.zeros((num_clusters, num_clusters), jnp.int32).at[
        c_row, c_col].set(1)
    rr, cc = jnp.nonzero(coarse_adj)
    coarsened_edge_index = jnp.stack([rr, cc]).astype(jnp.int32)

    return (coarsened_x, coarsened_edge_index, coarsened_batch,
            cluster_labels, losses)


# ----------------------------------------------------------------------------
if __name__ == "__main__":
    key = jax.random.PRNGKey(0)
    k_x, k_w, k_src, k_dst = jax.random.split(key, 4)

    # two graphs of 8 nodes each
    N, F, H = 16, 8, 16
    E_per, n_graphs = 16, 2
    x = jax.random.normal(k_x, (N, F), dtype=jnp.float32)
    batch = jnp.repeat(jnp.arange(n_graphs, dtype=jnp.int32), N // n_graphs)

    # random edges, kept within each graph
    src_list, dst_list = [], []
    for g in range(n_graphs):
        ks = jax.random.fold_in(k_src, g)
        kd = jax.random.fold_in(k_dst, g)
        lo, hi = g * (N // n_graphs), (g + 1) * (N // n_graphs)
        src_list.append(jax.random.randint(ks, (E_per,), lo, hi, dtype=jnp.int32))
        dst_list.append(jax.random.randint(kd, (E_per,), lo, hi, dtype=jnp.int32))
    edge_index = jnp.stack([jnp.concatenate(src_list), jnp.concatenate(dst_list)])

    # deterministic "parameters" of the concrete affinity head
    w = 0.1 * jax.random.normal(k_w, (F, H), dtype=jnp.float32)
    threshold = jnp.float32(-2.0)

    out = affinity_aggregation_forward(x, edge_index, batch, w, threshold,
                                       iters=10, alpha=0.9)
    jax.block_until_ready(out)

    coarsened_x, coarsened_edge_index, coarsened_batch, cluster_labels, losses = out
    assert coarsened_x.ndim == 2 and coarsened_x.shape[1] == F
    assert coarsened_edge_index.shape[0] == 2
    assert cluster_labels.shape == (N,)
    print("KERNEL_OK")
</pallas_src>

<mosaic_0001>
module attributes {stable_mosaic.version = 11 : i64} {
  func.func @_affinity_kernel(%arg0: i32, %arg1: memref<1x256xi32, #tpu.memory_space<vmem>>, %arg2: memref<1x256xi32, #tpu.memory_space<vmem>>, %arg3: memref<8x16xf32, #tpu.memory_space<vmem>>, %arg4: memref<16x8xf32, #tpu.memory_space<vmem>>, %arg5: memref<1x256xf32, #tpu.memory_space<vmem>>) attributes {dimension_semantics = [#tpu.dimension_semantics<parallel>], iteration_bounds = array<i64: 1>, scalar_prefetch = 0 : i64, scratch_operands = 0 : i64, tpu.core_type = #tpu.core_type<tc>, window_params = [{transform_indices = @transform_0, window_bounds = array<i64: 1, 256>}, {transform_indices = @transform_1, window_bounds = array<i64: 1, 256>}, {pipeline_mode = #tpu.pipeline_mode<synchronous>, transform_indices = @transform_2, window_bounds = array<i64: 8, 16>}, {pipeline_mode = #tpu.pipeline_mode<synchronous>, transform_indices = @transform_3, window_bounds = array<i64: 16, 8>}, {transform_indices = @transform_4, window_bounds = array<i64: 1, 256>}]} {
    %0 = tpu.iota {dimensions = array<i32: 0>} : vector<16x256xi32>
    %c0 = arith.constant 0 : index
    %c0_0 = arith.constant 0 : index
    %1 = vector.load %arg1[%c0, %c0_0] : memref<1x256xi32, #tpu.memory_space<vmem>>, vector<1x256xi32>
    %2 = vector.broadcast %1 : vector<1x256xi32> to vector<16x256xi32>
    %3 = arith.cmpi eq, %0, %2 : vector<16x256xi32>
    %4 = arith.extui %3 : vector<16x256xi1> to vector<16x256xi32>
    %5 = arith.sitofp %4 : vector<16x256xi32> to vector<16x256xf32>
    %c0_1 = arith.constant 0 : index
    %c0_2 = arith.constant 0 : index
    %6 = vector.load %arg2[%c0_1, %c0_2] : memref<1x256xi32, #tpu.memory_space<vmem>>, vector<1x256xi32>
    %7 = vector.broadcast %6 : vector<1x256xi32> to vector<16x256xi32>
    %8 = arith.cmpi eq, %0, %7 : vector<16x256xi32>
    %9 = arith.extui %8 : vector<16x256xi1> to vector<16x256xi32>
    %10 = arith.sitofp %9 : vector<16x256xi32> to vector<16x256xf32>
    %11 = arith.subf %5, %10 : vector<16x256xf32>
    %c0_3 = arith.constant 0 : index
    %c0_4 = arith.constant 0 : index
    %12 = vector.load %arg3[%c0_3, %c0_4] : memref<8x16xf32, #tpu.memory_space<vmem>>, vector<8x16xf32>
    %cst = arith.constant dense<0.000000e+00> : vector<8x256xf32>
    %13 = tpu.matmul %12, %11, %cst {dimension_numbers = #tpu.dot_dimension_numbers<[1], [0], [0], [1], [0, 0, 1, 1], [], []>} : vector<8x16xf32>, vector<16x256xf32>, vector<8x256xf32> -> vector<8x256xf32>
    %c0_5 = arith.constant 0 : index
    %c0_6 = arith.constant 0 : index
    %14 = vector.load %arg4[%c0_5, %c0_6] : memref<16x8xf32, #tpu.memory_space<vmem>>, vector<16x8xf32>
    %cst_7 = arith.constant dense<0.000000e+00> : vector<16x256xf32>
    %15 = tpu.matmul %14, %13, %cst_7 {dimension_numbers = #tpu.dot_dimension_numbers<[1], [0], [0], [1], [0, 0, 1, 1], [], []>} : vector<16x8xf32>, vector<8x256xf32>, vector<16x256xf32> -> vector<16x256xf32>
    %16 = arith.mulf %15, %15 : vector<16x256xf32>
    %cst_8 = arith.constant dense<0.000000e+00> : vector<256xf32>
    %17 = vector.multi_reduction <add>, %16, %cst_8 [0] : vector<16x256xf32> to vector<256xf32>
    %18 = vector.shape_cast %17 : vector<256xf32> to vector<1x256xf32>
    %cst_9 = arith.constant 0.000000e+00 : f32
    %19 = vector.broadcast %cst_9 : f32 to vector<1x256xf32>
    %20 = arith.subf %19, %18 : vector<1x256xf32>
    %c0_10 = arith.constant 0 : index
    %c0_11 = arith.constant 0 : index
    %21 = vector.load %arg5[%c0_10, %c0_11] : memref<1x256xf32, #tpu.memory_space<vmem>>, vector<1x256xf32>
    tpu.vector_store %arg5[%c0_10, %c0_11], %20 {strides = array<i32>} : memref<1x256xf32, #tpu.memory_space<vmem>>, vector<1x256xf32>,
    return
  }
  func.func @transform_0(%arg0: i32) -> (i32, i32) {
    %c0_i32 = arith.constant 0 : i32
    %c0_i32_0 = arith.constant 0 : i32
    return %c0_i32, %arg0 : i32, i32
  }
  func.func @transform_1(%arg0: i32) -> (i32, i32) {
    %c0_i32 = arith.constant 0 : i32
    %c0_i32_0 = arith.constant 0 : i32
    return %c0_i32, %arg0 : i32, i32
  }
  func.func @transform_2(%arg0: i32) -> (i32, i32) {
    %c0_i32 = arith.constant 0 : i32
    %c0_i32_0 = arith.constant 0 : i32
    %c0_i32_1 = arith.constant 0 : i32
    return %c0_i32, %c0_i32_0 : i32, i32
  }
  func.func @transform_3(%arg0: i32) -> (i32, i32) {
    %c0_i32 = arith.constant 0 : i32
    %c0_i32_0 = arith.constant 0 : i32
    %c0_i32_1 = arith.constant 0 : i32
    return %c0_i32, %c0_i32_0 : i32, i32
  }
  func.func @transform_4(%arg0: i32) -> (i32, i32) {
    %c0_i32 = arith.constant 0 : i32
    %c0_i32_0 = arith.constant 0 : i32
    return %c0_i32, %arg0 : i32, i32
  }
}

</mosaic_0001>

<llo_original>
// kernel: tpu_custom_call.1
$region0: #{tpu_custom_call.1}
  #allocation0 [shape = 'u32[]', space=smem, size = 0x4, offset = 0x4, fixed_abs, tag = 'smem constant byte address 0x4 - core index']
  #allocation1 [shape = 'u32[72,128]{1,0:T(1,128)}', space=vmem, size = 0x9000, scoped, tag = 'internal scratch']
  %s0 = inlined_call_operand.vmem [shape: s32[1,256], index: 0, kind: input, shape index: {}]
  %s1 = inlined_call_operand.vmem [shape: s32[1,256], index: 1, kind: input, shape index: {}]
  %s2 = inlined_call_operand.vmem [shape: f32[8,16], index: 2, kind: input, shape index: {}]
  %s3 = inlined_call_operand.vmem [shape: f32[16,8], index: 3, kind: input, shape index: {}]
  %s4 = inlined_call_operand.hbm [shape: f32[1,256], index: 4, kind: output, shape index: {}]
  %s5 = sld [smem:[#allocation0]]
  $region26: #{tpu_custom_call.1} parent=0
    _
  %s7 = ssub.s32 1, %s5
  %s8 = scalar_select 0, %s7, %s5
  $region1: #{tpu_custom_call.1} parent=0
    #allocation2 [shape = 'u8[1024]{0}', space=vmem, size = 0x400, scoped, tag = 'output window, operand 0, single buffered']
    #allocation3 [shape = 's32[1]{0}', space=sflag, size = 0x4, scoped, tag = 'scoped memory for tpu_custom_call.1']
    %9 = vsyncpa [#allocation3], 0
    // Predicated region
    $region2: #{tpu_custom_call.1} parent=1 // pred_check
      _
    $region3: #{tpu_custom_call.1} parent=1 // pred_check_branch
      %11 = sbr.rel (0) target = $region5
    $region4: #{tpu_custom_call.1} parent=1 // pred_region
      _
    $region5: #{tpu_custom_call.1} parent=1 // pred_fallthru
      _
    // Predicated region
    $region6: #{tpu_custom_call.1} parent=1 // pred_check
      _
    $region7: #{tpu_custom_call.1} parent=1 // pred_check_branch
      %13 = sbr.rel (0) target = $region9
    $region8: #{tpu_custom_call.1} parent=1 // pred_region
      _
    $region9: #{tpu_custom_call.1} parent=1 // pred_fallthru
      _
    // Predicated region
    $region10: #{tpu_custom_call.1} parent=1 // pred_check
      _
    $region11: #{tpu_custom_call.1} parent=1 // pred_check_branch
      %15 = sbr.rel (0) target = $region13
    $region12: #{tpu_custom_call.1} parent=1 // pred_region
      _
    $region13: #{tpu_custom_call.1} parent=1 // pred_fallthru
      _
    // Predicated region
    $region14: #{tpu_custom_call.1} parent=1 // pred_check
      _
    $region15: #{tpu_custom_call.1} parent=1 // pred_check_branch
      %17 = sbr.rel (0) target = $region17
    $region16: #{tpu_custom_call.1} parent=1 // pred_region
      _
    $region17: #{tpu_custom_call.1} parent=1 // pred_fallthru
      _
    %v18 = vlaneseq
    %v19 = vshrl.u32 %v18, 7
    %v20 = vadd.s32 %v19, 8
    %v21 = vld [vmem:[%s0] sm:$0x3]
    %v22 = vperm.slane %v21, 0
    %v23 = vperm.slane %v21, 1
    %vm24 = vcmp.eq.s32.totalorder %v19, %v22
    %vm25 = vcmp.eq.s32.totalorder %v19, %v23
    %vm26 = vcmp.eq.s32.totalorder %v20, %v22
    %vm27 = vcmp.eq.s32.totalorder %v20, %v23
    %v28 = vsel %vm24, 1, 0
    %v29 = vsel %vm25, 1, 0
    %v30 = vsel %vm26, 1, 0
    %v31 = vsel %vm27, 1, 0
    %v32 = vcvt.s32.f32 %v28
    %v33 = vcvt.s32.f32 %v29
    %v34 = vcvt.s32.f32 %v30
    %v35 = vcvt.s32.f32 %v31
    %v36 = vld [vmem:[%s1] sm:$0x3]
    %v37 = vperm.slane %v36, 0
    %v38 = vperm.slane %v36, 1
    %vm39 = vcmp.eq.s32.totalorder %v19, %v37
    %vm40 = vcmp.eq.s32.totalorder %v19, %v38
    %vm41 = vcmp.eq.s32.totalorder %v20, %v37
    %vm42 = vcmp.eq.s32.totalorder %v20, %v38
    %v43 = vsel %vm39, 1, 0
    %v44 = vsel %vm40, 1, 0
    %v45 = vsel %vm41, 1, 0
    %v46 = vsel %vm42, 1, 0
    %v47 = vcvt.s32.f32 %v43
    %v48 = vcvt.s32.f32 %v44
    %v49 = vcvt.s32.f32 %v45
    %v50 = vcvt.s32.f32 %v46
    %v51 = vsub.f32 %v32, %v47
    %v52 = vsub.f32 %v33, %v48
    %v53 = vsub.f32 %v34, %v49
    %v54 = vsub.f32 %v35, %v50
    %v55 = vld [vmem:[%s2] sm:$0xff]
    %vm56 = vcmask 130048
    %v58 = vsel %vm56, %v55, 0
    %60 = vmatpush.msra.mxu0 0.0
    %61 = vmatpush.msra.mxu0 0.0
    %62 = vmatpush.msra.mxu0 0.0
    %63 = vmatpush.msra.mxu0 0.0
    %64 = vmatpush.msra.mxu0 0.0
    %65 = vmatpush.msra.mxu0 0.0
    %66 = vmatpush.msra.mxu0 0.0
    %67 = vmatpush.msra.mxu0 0.0
    %68 = vmatpush.msra.mxu0 0.0
    %69 = vmatpush.msra.mxu0 0.0
    %70 = vmatpush.msra.mxu0 0.0
    %71 = vmatpush.msra.mxu0 0.0
    %72 = vmatpush.msra.mxu0 0.0
    %73 = vmatpush.msra.mxu0 0.0
    %74 = vmatpush.msra.mxu0 %v53
    %75 = vmatpush.msra.mxu0 %v51
    %76 = vmatmul.f32.gmra.mxu0 %v58
    %v77 = vpop.f32.mrf.mxu0
    %v78 = vadd.f32 0.0, %v77
    %79 = vdwg.mxu0
    %80 = vmatpush.msra.mxu0 0.0
    %81 = vmatpush.msra.mxu0 0.0
    %82 = vmatpush.msra.mxu0 0.0
    %83 = vmatpush.msra.mxu0 0.0
    %84 = vmatpush.msra.mxu0 0.0
    %85 = vmatpush.msra.mxu0 0.0
    %86 = vmatpush.msra.mxu0 0.0
    %87 = vmatpush.msra.mxu0 0.0
    %88 = vmatpush.msra.mxu0 0.0
    %89 = vmatpush.msra.mxu0 0.0
    %90 = vmatpush.msra.mxu0 0.0
    %91 = vmatpush.msra.mxu0 0.0
    %92 = vmatpush.msra.mxu0 0.0
    %93 = vmatpush.msra.mxu0 0.0
    %94 = vmatpush.msra.mxu0 %v54
    %95 = vmatpush.msra.mxu0 %v52
    %96 = vmatmul.f32.gmra.mxu0 %v58
    %v97 = vpop.f32.mrf.mxu0
    %v98 = vadd.f32 0.0, %v97
    %99 = vdwg.mxu0
    %v100 = vld [vmem:[%s3] sm:$0xff]
    %v101 = vld [vmem:[%s3 + $0x8] sm:$0xff]
    %vm102 = vcmask 64512
    %v104 = vsel %vm102, %v100, 0
    %v107 = vsel %vm102, %v101, 0
    %109 = vmatpush.msra.mxu0 0.0
    %110 = vmatpush.msra.mxu0 0.0
    %111 = vmatpush.msra.mxu0 0.0
    %112 = vmatpush.msra.mxu0 0.0
    %113 = vmatpush.msra.mxu0 0.0
    %114 = vmatpush.msra.mxu0 0.0
    %115 = vmatpush.msra.mxu0 0.0
    %116 = vmatpush.msra.mxu0 0.0
    %117 = vmatpush.msra.mxu0 0.0
    %118 = vmatpush.msra.mxu0 0.0
    %119 = vmatpush.msra.mxu0 0.0
    %120 = vmatpush.msra.mxu0 0.0
    %121 = vmatpush.msra.mxu0 0.0
    %122 = vmatpush.msra.mxu0 0.0
    %123 = vmatpush.msra.mxu0 0.0
    %124 = vmatpush.msra.mxu0 %v78
    %125 = vmatmul.f32.gmra.mxu0 %v104
    %v126 = vpop.f32.mrf.mxu0
    %v127 = vadd.f32 0.0, %v126
    %128 = vmatmul.f32.gmra.mxu0 %v107
    %v129 = vpop.f32.mrf.mxu0
    %v130 = vadd.f32 0.0, %v129
    %131 = vdwg.mxu0
    %132 = vmatpush.msra.mxu0 0.0
    %133 = vmatpush.msra.mxu0 0.0
    %134 = vmatpush.msra.mxu0 0.0
    %135 = vmatpush.msra.mxu0 0.0
    %136 = vmatpush.msra.mxu0 0.0
    %137 = vmatpush.msra.mxu0 0.0
    %138 = vmatpush.msra.mxu0 0.0
    %139 = vmatpush.msra.mxu0 0.0
    %140 = vmatpush.msra.mxu0 0.0
    %141 = vmatpush.msra.mxu0 0.0
    %142 = vmatpush.msra.mxu0 0.0
    %143 = vmatpush.msra.mxu0 0.0
    %144 = vmatpush.msra.mxu0 0.0
    %145 = vmatpush.msra.mxu0 0.0
    %146 = vmatpush.msra.mxu0 0.0
    %147 = vmatpush.msra.mxu0 %v98
    %148 = vmatmul.f32.gmra.mxu0 %v104
    %v149 = vpop.f32.mrf.mxu0
    %v150 = vadd.f32 0.0, %v149
    %151 = vmatmul.f32.gmra.mxu0 %v107
    %v152 = vpop.f32.mrf.mxu0
    %v153 = vadd.f32 0.0, %v152
    %154 = vdwg.mxu0
    %v155 = vmul.f32 %v127, %v127
    %v156 = vmul.f32 %v150, %v150
    %v157 = vmul.f32 %v130, %v130
    %v158 = vmul.f32 %v153, %v153
    %v159 = vadd.f32 %v155, %v157
    %v160 = vrot.slane %v159, 4
    %v161 = vadd.f32 %v159, %v160
    %v162 = vrot.slane %v161, 2
    %v163 = vadd.f32 %v161, %v162
    %v164 = vrot.slane %v163, 1
    %v165 = vadd.f32 %v163, %v164
    %v166 = vadd.f32 %v156, %v158
    %v167 = vrot.slane %v166, 4
    %v168 = vadd.f32 %v166, %v167
    %v169 = vrot.slane %v168, 2
    %v170 = vadd.f32 %v168, %v169
    %v171 = vrot.slane %v170, 1
    %v172 = vadd.f32 %v170, %v171
    %v173 = vsub.f32 0.0, %v165
    %v174 = vsub.f32 0.0, %v172
    %v177 = vrot.slane %v174, 7
    %vm178 = vcmask 1040384
    %v179 = vsel %vm178, %v173, %v177
    %v181 = vlaneseq
    %vm182 = vcmp.ge.s32.totalorder %v181, 0
    %vm183 = vcmp.lt.s32.totalorder %v181, 256
    %vm184 = vmand %vm182, %vm183
    %185 = vst.msk [vmem:[#allocation2] sm:$0x3] %vm184, %v179
    // Predicated region
    $region18: #{tpu_custom_call.1} parent=1 // pred_check
      _
    $region19: #{tpu_custom_call.1} parent=1 // pred_check_branch
      %187 = sbr.rel (0) target = $region21
    $region20: #{tpu_custom_call.1} parent=1 // pred_region
      %189 = vsyncadd [#allocation3], 0
      %s191 = sshll.u32 [#allocation2], 4
      %s192 = int_to_ptr.vmem [resolvable:$true] %s191
      %s193 = sshll.u32 %s4, 4
      %s194 = int_to_ptr.hbm [resolvable:$true] %s193
      %196 = dma.vmem_to_hbm [thread:$0]  %s192, 32, %s194, [#allocation3]
    $region21: #{tpu_custom_call.1} parent=1 // pred_fallthru
      _
    // Predicated region
    $region22: #{tpu_custom_call.1} parent=1 // pred_check
      _
    $region23: #{tpu_custom_call.1} parent=1 // pred_check_branch
      %198 = sbr.rel (0) target = $region25
    $region24: #{tpu_custom_call.1} parent=1 // pred_region
      %200 = dma.done [#allocation3], 32
    $region25: #{tpu_custom_call.1} parent=1 // pred_fallthru
      _
    %201 = vsyncpa [#allocation3], 1

</llo_original>
